<compile_context>
chip_gen: v7x
topology: tpu7x:2x2x1
jax: 0.10.0
libtpu: 0.0.40
codegen_flags: <defaults>
</compile_context>

<pallas_src>
import functools
import math

import jax
import jax.numpy as jnp
from jax.experimental import pallas as pl
from jax.experimental.pallas import tpu as pltpu


# ----------------------------- Pallas kernel -------------------------------- #
# Packed aux buffer (f32, [1, 768]); every slot is 128-lane aligned:
#   [  0:128)  b_in = [fc_s bias || fc_a bias]
#   [128:384)  b1
#   [384:512)  b2
#   [512:640)  b3 padded to 128 lanes; lane 64 is a constant 1.0 (fc_out bias lane)
#   [640:768)  fc_out row padded to 128 lanes; lane 64 holds the fc_out bias
_PK_LANES = 768


def qnet_kernel(x_ref, w_in_ref, w1_ref, w2_ref, w3_ref, pk_ref, out_ref, *,
                n_sub, sub):
    f32, bf16 = jnp.float32, jnp.bfloat16

    # Full-vreg (128-lane-multiple) slices of the packed buffer, hoisted once.
    b_in = pk_ref[:, 0:128]
    b1 = pk_ref[:, 128:384]
    b2 = pk_ref[:, 384:512]
    b3 = pk_ref[:, 512:640]
    wo = pk_ref[:, 640:768]
    # Sublane-broadcast the fc_out row so the final matmul has an aligned M dim.
    wo8 = jnp.broadcast_to(wo, (8, 128))                     # hoisted (no CSE in loops)

    # Process the (tb, 16) batch tile in `n_sub` sub-chunks of `sub` rows each so
    # the live (sub, 256) intermediate stays well inside the 64-vreg file.
    for m in range(n_sub):                                   # static trip count (1..4)
        rows = pl.ds(m * sub, sub)
        x = x_ref[rows, :]                                   # (sub, 16) bf16
        # Fused fc_s + fc_a: block-diagonal input projection, ReLU on both halves.
        h = jnp.maximum(
            jnp.dot(x, w_in_ref[...], preferred_element_type=f32) + b_in, 0.0)
        # fc1 (128->256), fc2 (256->128), fc3 (128->128 zero-padded), bf16 MXU / f32 acc.
        h = jnp.maximum(
            jnp.dot(h.astype(bf16), w1_ref[...], preferred_element_type=f32) + b1, 0.0)
        h = jnp.maximum(
            jnp.dot(h.astype(bf16), w2_ref[...], preferred_element_type=f32) + b2, 0.0)
        h = jnp.maximum(
            jnp.dot(h.astype(bf16), w3_ref[...], preferred_element_type=f32) + b3, 0.0)
        # fc_out (64 -> 1) in f32: wo_row @ h.T gives a lane-dense (., sub) row and
        # the constant-1 lane 64 of h adds the fc_out bias exactly.
        q = jnp.dot(wo8, h.T, preferred_element_type=f32)    # (8, sub), rows identical
        out_ref[:, rows] = q[0:1, :].astype(out_ref.dtype)   # lane-dense store


def _round_up(x, m):
    return ((x + m - 1) // m) * m


def qnetwork_forward(state, action, params, *, tb=None):
    """QNetwork forward.  params = (ws, bs, wa, ba, w1, b1, w2, b2, w3, b3, wo, bo)
    with weights stored as [in, out] and biases as [1, out]."""
    ws, bs, wa, ba, w1, b1, w2, b2, w3, b3, wo, bo = params
    B = state.shape[0]
    f32, bf16 = jnp.float32, jnp.bfloat16

    # Tile-size selection: keep >= 2 grid steps when B > 128 (v7x megacore sharding),
    # grow tiles at large B to amortize the ~0.35us per-grid-step fixed overhead.
    if tb is None:
        if B <= 128:
            tb = _round_up(B, 16)
        elif B <= 256:
            tb = 128
        elif B <= 1024:
            tb = 256
        else:
            tb = 512
    if tb > 128:
        if tb % 128:
            raise ValueError("tb > 128 must be a multiple of 128")
        sub, n_sub = 128, tb // 128
    else:
        sub, n_sub = tb, 1

    n_tiles = pl.cdiv(B, tb)
    b_pad = n_tiles * tb

    # ---- operand prep (tiny, runs once per call under XLA) ----
    x = jnp.concatenate([state, action], axis=-1).astype(bf16)           # (B, 16)
    if b_pad != B:
        x = jnp.pad(x, ((0, b_pad - B), (0, 0)))                         # (B_pad, 16)

    # Fused block-diagonal input weight: [state | action] @ W_in == [h1_pre | h2_pre].
    w_in = jnp.zeros((16, 128), f32)
    w_in = w_in.at[:15, :64].set(ws).at[15:, 64:].set(wa)

    # fc3 padded 64 -> 128 outputs; output lane 64 is a constant-1 bias lane so the
    # fc_out bias rides the fc_out row (keeps every pk slot 128-lane aligned).
    w3p = jnp.zeros((128, 128), f32).at[:, :64].set(w3)
    b3p = jnp.zeros((1, 128), f32).at[:, :64].set(b3).at[0, 64].set(1.0)
    wop = jnp.zeros((1, 128), f32).at[0, :64].set(wo[:, 0]).at[0, 64].set(bo[0, 0])

    b_in = jnp.concatenate([bs, ba], axis=-1)                             # (1, 128)
    pk = jnp.concatenate([b_in, b1, b2, b3p, wop], axis=-1)               # (1, 768)

    kernel = functools.partial(qnet_kernel, n_sub=n_sub, sub=sub)

    def const_spec(shape):
        # Resident across the whole grid; single-buffered (block index never changes).
        return pl.BlockSpec(shape, lambda i: (0, 0), pipeline_mode=pl.Buffered(1))

    out_row = pl.pallas_call(
        kernel,
        out_shape=jax.ShapeDtypeStruct((1, b_pad), f32),
        grid=(n_tiles,),
        in_specs=[
            pl.BlockSpec((tb, 16), lambda i: (i, 0)),     # x, batch-tiled
            const_spec((16, 128)),                        # fused W_in   (bf16)
            const_spec((128, 256)),                       # W1           (bf16)
            const_spec((256, 128)),                       # W2           (bf16)
            const_spec((128, 128)),                       # W3 padded    (bf16)
            const_spec((1, _PK_LANES)),                   # packed biases + fc_out (f32)
        ],
        out_specs=pl.BlockSpec((1, tb), lambda i: (0, i)),  # lane-dense output row
        compiler_params=pltpu.CompilerParams(
            dimension_semantics=("parallel",)),
    )(x, w_in.astype(bf16), w1.astype(bf16), w2.astype(bf16),
      w3p.astype(bf16), pk)

    # Lane-dense layout fills padded tail lanes of the last partial tile with
    # garbage rows; slice them off before returning the (B, 1) result.
    return out_row[0, :B].reshape(B, 1)


# --------------------- deterministic NoisyLayer params ---------------------- #
def _f(x):
    return jnp.sign(x) * jnp.sqrt(jnp.abs(x))


def noisy_linear_params(key, in_f, out_f, sigma_init=0.5):
    """Effective NoisyLayer weights (mu + sigma * factorized eps), materialized
    deterministically in plain JAX.  Returns W_eff [in,out], b_eff [1,out]."""
    k_mu_w, k_mu_b, k_eps_in, k_eps_out = jax.random.split(key, 4)
    mu_range = 1.0 / math.sqrt(in_f)
    weight_mu = jax.random.uniform(k_mu_w, (out_f, in_f), jnp.float32,
                                   -mu_range, mu_range)
    bias_mu = jax.random.uniform(k_mu_b, (out_f,), jnp.float32,
                                 -mu_range, mu_range)
    weight_sigma = jnp.full((out_f, in_f), sigma_init / math.sqrt(in_f), jnp.float32)
    bias_sigma = jnp.full((out_f,), sigma_init / math.sqrt(in_f), jnp.float32)

    eps_in = _f(jax.random.normal(k_eps_in, (in_f,), jnp.float32))
    eps_out = _f(jax.random.normal(k_eps_out, (out_f,), jnp.float32))
    weight_eps = jnp.outer(eps_out, eps_in)
    bias_eps = eps_out

    w_eff = weight_mu + weight_sigma * weight_eps        # [out, in]
    b_eff = bias_mu + bias_sigma * bias_eps              # [out]
    return w_eff.T, b_eff.reshape(1, out_f)              # [in, out], [1, out]


def build_params(key):
    keys = jax.random.split(key, 6)
    ws, bs = noisy_linear_params(keys[0], 15, 64)    # fc_s
    wa, ba = noisy_linear_params(keys[1], 1, 64)     # fc_a
    w1, b1 = noisy_linear_params(keys[2], 128, 256)  # fc1
    w2, b2 = noisy_linear_params(keys[3], 256, 128)  # fc2
    w3, b3 = noisy_linear_params(keys[4], 128, 64)   # fc3
    wo, bo = noisy_linear_params(keys[5], 64, 1)     # fc_out
    return (ws, bs, wa, ba, w1, b1, w2, b2, w3, b3, wo, bo)


# ------------------------- pure-JAX reference check ------------------------- #
def reference_forward(state, action, params, matmul_dtype=jnp.float32):
    """Pure-JAX reference.  matmul_dtype=bfloat16 mirrors the kernel's MXU casts
    (f32 accumulation / bias / ReLU, f32 fc_out) for a tight numerical check."""
    ws, bs, wa, ba, w1, b1, w2, b2, w3, b3, wo, bo = params

    def mm(x, w):
        return jnp.dot(x.astype(matmul_dtype), w.astype(matmul_dtype),
                       preferred_element_type=jnp.float32)

    h1 = jax.nn.relu(mm(state, ws) + bs)
    h2 = jax.nn.relu(mm(action, wa) + ba)
    cat = jnp.concatenate([h1, h2], axis=-1)
    q = jax.nn.relu(mm(cat, w1) + b1)
    q = jax.nn.relu(mm(q, w2) + b2)
    q = jax.nn.relu(mm(q, w3) + b3)
    return q @ wo + bo                                   # fc_out in f32, as in the kernel


if __name__ == "__main__":
    key = jax.random.PRNGKey(0)
    _, _, k_params = jax.random.split(key, 3)
    params = build_params(k_params)

    def check(B, seed, tb=None):
        ks, ka = jax.random.split(jax.random.PRNGKey(seed))
        state = jax.random.normal(ks, (B, 15), jnp.float32)
        action = jax.random.normal(ka, (B, 1), jnp.float32)
        out = jax.block_until_ready(qnetwork_forward(state, action, params, tb=tb))
        assert out.shape == (B, 1), out.shape
        # Tight check vs. a reference that mirrors the kernel's bf16 matmul casts.
        ref_bf16 = reference_forward(state, action, params, jnp.bfloat16)
        assert jnp.allclose(out, ref_bf16, atol=2e-3, rtol=2e-3), (
            B, float(jnp.max(jnp.abs(out - ref_bf16))))
        # Loose sanity check vs. the pure-f32 reference (bf16 MXU rounding only).
        ref_f32 = reference_forward(state, action, params, jnp.float32)
        assert jnp.allclose(out, ref_f32, atol=1e-1, rtol=1e-1), (
            B, float(jnp.max(jnp.abs(out - ref_f32))))

    check(8, 1)              # tiny per-env-step batch, single tile
    check(200, 2)            # two tiles + padded partial tile (lane-dense out sliced)
    check(256, 3, tb=256)    # forces the in-kernel 128-row sub-chunk path (n_sub=2)

    print("KERNEL_OK")
</pallas_src>

<mosaic_0001>
module attributes {stable_mosaic.version = 11 : i64} {
  func.func @qnet_kernel(%arg0: i32, %arg1: memref<16x16xbf16, #tpu.memory_space<vmem>>, %arg2: memref<16x128xbf16, #tpu.memory_space<vmem>>, %arg3: memref<128x256xbf16, #tpu.memory_space<vmem>>, %arg4: memref<256x128xbf16, #tpu.memory_space<vmem>>, %arg5: memref<128x128xbf16, #tpu.memory_space<vmem>>, %arg6: memref<1x768xf32, #tpu.memory_space<vmem>>, %arg7: memref<1x16xf32, #tpu.memory_space<vmem>>) attributes {dimension_semantics = [#tpu.dimension_semantics<parallel>], iteration_bounds = array<i64: 1>, scalar_prefetch = 0 : i64, scratch_operands = 0 : i64, tpu.core_type = #tpu.core_type<tc>, window_params = [{transform_indices = @transform_0, window_bounds = array<i64: 16, 16>}, {pipeline_mode = #tpu.pipeline_mode<synchronous>, transform_indices = @transform_1, window_bounds = array<i64: 16, 128>}, {pipeline_mode = #tpu.pipeline_mode<synchronous>, transform_indices = @transform_2, window_bounds = array<i64: 128, 256>}, {pipeline_mode = #tpu.pipeline_mode<synchronous>, transform_indices = @transform_3, window_bounds = array<i64: 256, 128>}, {pipeline_mode = #tpu.pipeline_mode<synchronous>, transform_indices = @transform_4, window_bounds = array<i64: 128, 128>}, {pipeline_mode = #tpu.pipeline_mode<synchronous>, transform_indices = @transform_5, window_bounds = array<i64: 1, 768>}, {transform_indices = @transform_6, window_bounds = array<i64: 1, 16>}]} {
    %c0 = arith.constant 0 : index
    %c0_0 = arith.constant 0 : index
    %0 = vector.load %arg6[%c0, %c0_0] : memref<1x768xf32, #tpu.memory_space<vmem>>, vector<1x128xf32>
    %c0_1 = arith.constant 0 : index
    %c128 = arith.constant 128 : index
    %1 = vector.load %arg6[%c0_1, %c128] : memref<1x768xf32, #tpu.memory_space<vmem>>, vector<1x256xf32>
    %c0_2 = arith.constant 0 : index
    %c384 = arith.constant 384 : index
    %2 = vector.load %arg6[%c0_2, %c384] : memref<1x768xf32, #tpu.memory_space<vmem>>, vector<1x128xf32>
    %c0_3 = arith.constant 0 : index
    %c512 = arith.constant 512 : index
    %3 = vector.load %arg6[%c0_3, %c512] : memref<1x768xf32, #tpu.memory_space<vmem>>, vector<1x128xf32>
    %c0_4 = arith.constant 0 : index
    %c640 = arith.constant 640 : index
    %4 = vector.load %arg6[%c0_4, %c640] : memref<1x768xf32, #tpu.memory_space<vmem>>, vector<1x128xf32>
    %5 = vector.shape_cast %4 : vector<1x128xf32> to vector<1x128xf32>
    %6 = vector.broadcast %5 : vector<1x128xf32> to vector<8x128xf32>
    %c0_5 = arith.constant 0 : index
    %c0_6 = arith.constant 0 : index
    %7 = vector.load %arg1[%c0_5, %c0_6] : memref<16x16xbf16, #tpu.memory_space<vmem>>, vector<16x16xbf16>
    %c0_7 = arith.constant 0 : index
    %c0_8 = arith.constant 0 : index
    %8 = vector.load %arg2[%c0_7, %c0_8] : memref<16x128xbf16, #tpu.memory_space<vmem>>, vector<16x128xbf16>
    %cst = arith.constant dense<0.000000e+00> : vector<16x128xf32>
    %9 = tpu.matmul %7, %8, %cst {dimension_numbers = #tpu.dot_dimension_numbers<[1], [0], [0], [1], [0, 0, 1, 1], [], []>} : vector<16x16xbf16>, vector<16x128xbf16>, vector<16x128xf32> -> vector<16x128xf32>
    %10 = vector.broadcast %0 : vector<1x128xf32> to vector<16x128xf32>
    %11 = arith.addf %9, %10 : vector<16x128xf32>
    %cst_9 = arith.constant 0.000000e+00 : f32
    %12 = vector.broadcast %cst_9 : f32 to vector<16x128xf32>
    %13 = arith.maximumf %11, %12 : vector<16x128xf32>
    %14 = arith.truncf %13 : vector<16x128xf32> to vector<16x128xbf16>
    %c0_10 = arith.constant 0 : index
    %c0_11 = arith.constant 0 : index
    %15 = vector.load %arg3[%c0_10, %c0_11] : memref<128x256xbf16, #tpu.memory_space<vmem>>, vector<128x256xbf16>
    %cst_12 = arith.constant dense<0.000000e+00> : vector<16x256xf32>
    %16 = tpu.matmul %14, %15, %cst_12 {dimension_numbers = #tpu.dot_dimension_numbers<[1], [0], [0], [1], [0, 0, 1, 1], [], []>} : vector<16x128xbf16>, vector<128x256xbf16>, vector<16x256xf32> -> vector<16x256xf32>
    %17 = vector.broadcast %1 : vector<1x256xf32> to vector<16x256xf32>
    %18 = arith.addf %16, %17 : vector<16x256xf32>
    %cst_13 = arith.constant 0.000000e+00 : f32
    %19 = vector.broadcast %cst_13 : f32 to vector<16x256xf32>
    %20 = arith.maximumf %18, %19 : vector<16x256xf32>
    %21 = arith.truncf %20 : vector<16x256xf32> to vector<16x256xbf16>
    %c0_14 = arith.constant 0 : index
    %c0_15 = arith.constant 0 : index
    %22 = vector.load %arg4[%c0_14, %c0_15] : memref<256x128xbf16, #tpu.memory_space<vmem>>, vector<256x128xbf16>
    %cst_16 = arith.constant dense<0.000000e+00> : vector<16x128xf32>
    %23 = tpu.matmul %21, %22, %cst_16 {dimension_numbers = #tpu.dot_dimension_numbers<[1], [0], [0], [1], [0, 0, 1, 1], [], []>} : vector<16x256xbf16>, vector<256x128xbf16>, vector<16x128xf32> -> vector<16x128xf32>
    %24 = vector.broadcast %2 : vector<1x128xf32> to vector<16x128xf32>
    %25 = arith.addf %23, %24 : vector<16x128xf32>
    %cst_17 = arith.constant 0.000000e+00 : f32
    %26 = vector.broadcast %cst_17 : f32 to vector<16x128xf32>
    %27 = arith.maximumf %25, %26 : vector<16x128xf32>
    %28 = arith.truncf %27 : vector<16x128xf32> to vector<16x128xbf16>
    %c0_18 = arith.constant 0 : index
    %c0_19 = arith.constant 0 : index
    %29 = vector.load %arg5[%c0_18, %c0_19] : memref<128x128xbf16, #tpu.memory_space<vmem>>, vector<128x128xbf16>
    %cst_20 = arith.constant dense<0.000000e+00> : vector<16x128xf32>
    %30 = tpu.matmul %28, %29, %cst_20 {dimension_numbers = #tpu.dot_dimension_numbers<[1], [0], [0], [1], [0, 0, 1, 1], [], []>} : vector<16x128xbf16>, vector<128x128xbf16>, vector<16x128xf32> -> vector<16x128xf32>
    %31 = vector.broadcast %3 : vector<1x128xf32> to vector<16x128xf32>
    %32 = arith.addf %30, %31 : vector<16x128xf32>
    %cst_21 = arith.constant 0.000000e+00 : f32
    %33 = vector.broadcast %cst_21 : f32 to vector<16x128xf32>
    %34 = arith.maximumf %32, %33 : vector<16x128xf32>
    %35 = tpu.transpose %34, [1, 0] : vector<16x128xf32> -> vector<128x16xf32>
    %cst_22 = arith.constant dense<0.000000e+00> : vector<8x16xf32>
    %36 = tpu.matmul %6, %35, %cst_22 {dimension_numbers = #tpu.dot_dimension_numbers<[1], [0], [0], [1], [0, 0, 1, 1], [], []>} : vector<8x128xf32>, vector<128x16xf32>, vector<8x16xf32> -> vector<8x16xf32>
    %37 = vector.extract_strided_slice %36 {offsets = [0, 0], sizes = [1, 16], strides = [1, 1]} : vector<8x16xf32> to vector<1x16xf32>
    %c0_23 = arith.constant 0 : index
    %c0_24 = arith.constant 0 : index
    %38 = vector.load %arg7[%c0_23, %c0_24] : memref<1x16xf32, #tpu.memory_space<vmem>>, vector<1x16xf32>
    tpu.vector_store %arg7[%c0_23, %c0_24], %37 {strides = array<i32>} : memref<1x16xf32, #tpu.memory_space<vmem>>, vector<1x16xf32>,
    return
  }
  func.func @transform_0(%arg0: i32) -> (i32, i32) {
    %c0_i32 = arith.constant 0 : i32
    %c0_i32_0 = arith.constant 0 : i32
    return %arg0, %c0_i32 : i32, i32
  }
  func.func @transform_1(%arg0: i32) -> (i32, i32) {
    %c0_i32 = arith.constant 0 : i32
    %c0_i32_0 = arith.constant 0 : i32
    %c0_i32_1 = arith.constant 0 : i32
    return %c0_i32, %c0_i32_0 : i32, i32
  }
  func.func @transform_2(%arg0: i32) -> (i32, i32) {
    %c0_i32 = arith.constant 0 : i32
    %c0_i32_0 = arith.constant 0 : i32
    %c0_i32_1 = arith.constant 0 : i32
    return %c0_i32, %c0_i32_0 : i32, i32
  }
  func.func @transform_3(%arg0: i32) -> (i32, i32) {
    %c0_i32 = arith.constant 0 : i32
    %c0_i32_0 = arith.constant 0 : i32
    %c0_i32_1 = arith.constant 0 : i32
    return %c0_i32, %c0_i32_0 : i32, i32
  }
  func.func @transform_4(%arg0: i32) -> (i32, i32) {
    %c0_i32 = arith.constant 0 : i32
    %c0_i32_0 = arith.constant 0 : i32
    %c0_i32_1 = arith.constant 0 : i32
    return %c0_i32, %c0_i32_0 : i32, i32
  }
  func.func @transform_5(%arg0: i32) -> (i32, i32) {
    %c0_i32 = arith.constant 0 : i32
    %c0_i32_0 = arith.constant 0 : i32
    %c0_i32_1 = arith.constant 0 : i32
    return %c0_i32, %c0_i32_0 : i32, i32
  }
  func.func @transform_6(%arg0: i32) -> (i32, i32) {
    %c0_i32 = arith.constant 0 : i32
    %c0_i32_0 = arith.constant 0 : i32
    return %c0_i32, %arg0 : i32, i32
  }
}

</mosaic_0001>

<llo_original>
// kernel: tpu_custom_call.1
$region0: #{tpu_custom_call.1}
  #allocation0 [shape = 'u32[]', space=smem, size = 0x4, offset = 0x4, fixed_abs, tag = 'smem constant byte address 0x4 - core index']
  #allocation1 [shape = 'u32[144,128]{1,0:T(1,128)}', space=vmem, size = 0x12000, scoped, tag = 'internal scratch']
  %s0 = inlined_call_operand.hbm [shape: bf16[16,16], index: 0, kind: input, shape index: {}]
  %s1 = inlined_call_operand.hbm [shape: bf16[16,128], index: 1, kind: input, shape index: {}]
  %s2 = inlined_call_operand.hbm [shape: bf16[128,256], index: 2, kind: input, shape index: {}]
  %s3 = inlined_call_operand.hbm [shape: bf16[256,128], index: 3, kind: input, shape index: {}]
  %s4 = inlined_call_operand.hbm [shape: bf16[128,128], index: 4, kind: input, shape index: {}]
  %s5 = inlined_call_operand.vmem [shape: f32[1,768], index: 5, kind: input, shape index: {}]
  %s6 = inlined_call_operand.hbm [shape: f32[1,16], index: 6, kind: output, shape index: {}]
  %s7 = sld [smem:[#allocation0]]
  $region54: #{tpu_custom_call.1} parent=0
    _
  %s9 = ssub.s32 1, %s7
  %s10 = scalar_select 0, %s9, %s7
  $region1: #{tpu_custom_call.1} parent=0
    #allocation2 [shape = 'u8[4096]{0}', space=vmem, size = 0x1000, scoped, tag = 'input window, operand 0, single buffered']
    #allocation3 [shape = 's32[1]{0}', space=sflag, size = 0x4, scoped, tag = 'scoped memory for tpu_custom_call.1']
    #allocation4 [shape = 's32[1]{0}', space=sflag, size = 0x4, scoped, tag = 'scoped memory for tpu_custom_call.1']
    #allocation5 [shape = 'u8[4096]{0}', space=vmem, size = 0x1000, scoped, tag = 'input window, operand 1, single buffered']
    #allocation6 [shape = 's32[1]{0}', space=sflag, size = 0x4, scoped, tag = 'scoped memory for tpu_custom_call.1']
    #allocation7 [shape = 'u8[65536]{0}', space=vmem, size = 0x10000, scoped, tag = 'input window, operand 2, single buffered']
    #allocation8 [shape = 'u8[65536]{0}', space=vmem, size = 0x10000, scoped, tag = 'input window, operand 3, single buffered']
    #allocation9 [shape = 's32[1]{0}', space=sflag, size = 0x4, scoped, tag = 'scoped memory for tpu_custom_call.1']
    #allocation10 [shape = 'u8[32768]{0}', space=vmem, size = 0x8000, scoped, tag = 'input window, operand 4, single buffered']
    #allocation11 [shape = 'u8[512]{0}', space=vmem, size = 0x400, scoped, tag = 'output window, operand 0, single buffered']
    %11 = vsyncpa [#allocation3], 0
    %12 = vsyncpa [#allocation6], 0
    %13 = vsyncpa [#allocation9], 0
    %14 = vsyncpa [#allocation4], 0
    // Predicated region
    $region2: #{tpu_custom_call.1} parent=1 // pred_check
      _
    $region3: #{tpu_custom_call.1} parent=1 // pred_check_branch
      %16 = sbr.rel (0) target = $region5
    $region4: #{tpu_custom_call.1} parent=1 // pred_region
      %s18 = ssub.s32 128, 128
      %19 = vsyncadd [#allocation3], %s18
      %s20 = sshll.u32 [#allocation2], 4
      %s21 = int_to_ptr.vmem [resolvable:$true] %s20
      %26 = dma.hbm_to_vmem [thread:$0]  %s0, 128, %s21, [#allocation3], 64, 64, 4
    $region5: #{tpu_custom_call.1} parent=1 // pred_fallthru
      _
    // Predicated region
    $region6: #{tpu_custom_call.1} parent=1 // pred_check
      _
    $region7: #{tpu_custom_call.1} parent=1 // pred_check_branch
      %28 = sbr.rel (0) target = $region9
    $region8: #{tpu_custom_call.1} parent=1 // pred_region
      %s30 = ssub.s32 128, 128
      %31 = vsyncadd [#allocation6], %s30
      %s32 = sshll.u32 [#allocation5], 4
      %s33 = int_to_ptr.vmem [resolvable:$true] %s32
      %38 = dma.hbm_to_vmem [thread:$0]  %s1, 128, %s33, [#allocation6], 64, 64, 4
    $region9: #{tpu_custom_call.1} parent=1 // pred_fallthru
      _
    // Predicated region
    $region10: #{tpu_custom_call.1} parent=1 // pred_check
      _
    $region11: #{tpu_custom_call.1} parent=1 // pred_check_branch
      %40 = sbr.rel (0) target = $region13
    $region12: #{tpu_custom_call.1} parent=1 // pred_region
      %s42 = ssub.s32 2048, 2048
      %43 = vsyncadd [#allocation6], %s42
      %s44 = sshll.u32 [#allocation7], 4
      %s45 = int_to_ptr.vmem [resolvable:$true] %s44
      %50 = dma.hbm_to_vmem [thread:$0]  %s2, 2048, %s45, [#allocation6], 128, 128, 8
    $region13: #{tpu_custom_call.1} parent=1 // pred_fallthru
      _
    // Predicated region
    $region14: #{tpu_custom_call.1} parent=1 // pred_check
      _
    $region15: #{tpu_custom_call.1} parent=1 // pred_check_branch
      %52 = sbr.rel (0) target = $region17
    $region16: #{tpu_custom_call.1} parent=1 // pred_region
      %s54 = ssub.s32 2048, 2048
      %55 = vsyncadd [#allocation9], %s54
      %s56 = sshll.u32 [#allocation8], 4
      %s57 = int_to_ptr.vmem [resolvable:$true] %s56
      %62 = dma.hbm_to_vmem [thread:$0]  %s3, 2048, %s57, [#allocation9], 64, 64, 4
    $region17: #{tpu_custom_call.1} parent=1 // pred_fallthru
      _
    // Predicated region
    $region18: #{tpu_custom_call.1} parent=1 // pred_check
      _
    $region19: #{tpu_custom_call.1} parent=1 // pred_check_branch
      %64 = sbr.rel (0) target = $region21
    $region20: #{tpu_custom_call.1} parent=1 // pred_region
      %s66 = ssub.s32 1024, 1024
      %67 = vsyncadd [#allocation9], %s66
      %s68 = sshll.u32 [#allocation10], 4
      %s69 = int_to_ptr.vmem [resolvable:$true] %s68
      %74 = dma.hbm_to_vmem [thread:$0]  %s4, 1024, %s69, [#allocation9], 64, 64, 4
    $region21: #{tpu_custom_call.1} parent=1 // pred_fallthru
      _
    // Predicated region
    $region22: #{tpu_custom_call.1} parent=1 // pred_check
      _
    $region23: #{tpu_custom_call.1} parent=1 // pred_check_branch
      %76 = sbr.rel (0) target = $region25
    $region24: #{tpu_custom_call.1} parent=1 // pred_region
      _
    $region25: #{tpu_custom_call.1} parent=1 // pred_fallthru
      _
    // Predicated region
    $region26: #{tpu_custom_call.1} parent=1 // pred_check
      _
    $region27: #{tpu_custom_call.1} parent=1 // pred_check_branch
      %78 = sbr.rel (0) target = $region29
    $region28: #{tpu_custom_call.1} parent=1 // pred_region
      %79 = dma.done [#allocation3], 128
    $region29: #{tpu_custom_call.1} parent=1 // pred_fallthru
      _
    // Predicated region
    $region30: #{tpu_custom_call.1} parent=1 // pred_check
      _
    $region31: #{tpu_custom_call.1} parent=1 // pred_check_branch
      %81 = sbr.rel (0) target = $region33
    $region32: #{tpu_custom_call.1} parent=1 // pred_region
      %82 = dma.done [#allocation6], 128
    $region33: #{tpu_custom_call.1} parent=1 // pred_fallthru
      _
    // Predicated region
    $region34: #{tpu_custom_call.1} parent=1 // pred_check
      _
    $region35: #{tpu_custom_call.1} parent=1 // pred_check_branch
      %84 = sbr.rel (0) target = $region37
    $region36: #{tpu_custom_call.1} parent=1 // pred_region
      %85 = dma.done [#allocation6], 2048
    $region37: #{tpu_custom_call.1} parent=1 // pred_fallthru
      _
    // Predicated region
    $region38: #{tpu_custom_call.1} parent=1 // pred_check
      _
    $region39: #{tpu_custom_call.1} parent=1 // pred_check_branch
      %87 = sbr.rel (0) target = $region41
    $region40: #{tpu_custom_call.1} parent=1 // pred_region
      %88 = dma.done [#allocation9], 2048
    $region41: #{tpu_custom_call.1} parent=1 // pred_fallthru
      _
    // Predicated region
    $region42: #{tpu_custom_call.1} parent=1 // pred_check
      _
    $region43: #{tpu_custom_call.1} parent=1 // pred_check_branch
      %90 = sbr.rel (0) target = $region45
    $region44: #{tpu_custom_call.1} parent=1 // pred_region
      %91 = dma.done [#allocation9], 1024
    $region45: #{tpu_custom_call.1} parent=1 // pred_fallthru
      _
    %v93 = vld [vmem:[%s5] sm:$0x1]
    %v94 = vld [vmem:[%s5 + $0x1] sm:$0x3]
    %v95 = vld [vmem:[%s5 + $0x3] sm:$0x1]
    %v96 = vld [vmem:[%s5 + $0x4] sm:$0x1]
    %v97 = vld [vmem:[%s5 + $0x5] sm:$0x1]
    %v99 = vlaneseq
    %v100 = vshrl.u32 %v99, 7
    %v101 = vsub.s32 0, %v100
    %v102 = vrot.slane %v97, %v101
    %v104 = vld [vmem:[#allocation2] sm:$0xf]
    %v105 = vld [vmem:[#allocation2 + $0x4] sm:$0xf]
    %v106 = vld [vmem:[#allocation5] sm:$0xf]
    %v107 = vld [vmem:[#allocation5 + $0x4] sm:$0xf]
    %v109 = vlaneseq
    %v110 = vshrl.u32 %v109, 7
    %v111 = vsub.s32 0, %v110
    %v112 = vrot.slane %v93, %v111
    %v116 = vunpack.c.l.b16 %v104
    %v117 = vunpack.c.l.b16 %v105
    %v118 = vpack.c.b16 %v117, %v116
    %v121 = vunpack.c.l.b16 %v106
    %v122 = vunpack.c.l.b16 %v107
    %v123 = vpack.c.b16 %v122, %v121
    %vm125 = vcmask 130048
    %v127 = vsel %vm125, %v118, 0
    %129 = vmatprep.subr.bf16.mxu0 0
    %130 = vmatpush1.bf16.msra.mxu0 %v123
    %131 = vmatprep.subr.bf16.mxu0 0
    %132 = vmatpush1.bf16.msra.mxu0 0
    %133 = vmatprep.subr.bf16.mxu0 0
    %134 = vmatpush1.bf16.msra.mxu0 0
    %135 = vmatprep.subr.bf16.mxu0 0
    %136 = vmatpush1.bf16.msra.mxu0 0
    %137 = vmatprep.subr.bf16.mxu0 0
    %138 = vmatpush1.bf16.msra.mxu0 0
    %139 = vmatprep.subr.bf16.mxu0 0
    %140 = vmatpush1.bf16.msra.mxu0 0
    %141 = vmatprep.subr.bf16.mxu0 0
    %142 = vmatpush1.bf16.msra.mxu0 0
    %143 = vmatprep.subr.bf16.mxu0 0
    %144 = vmatpush1.bf16.msra.mxu0 0
    %145 = vmatprep.subr.bf16.mxu0 0
    %146 = vmatpush1.bf16.msra.mxu0 0
    %147 = vmatprep.subr.bf16.mxu0 0
    %148 = vmatpush1.bf16.msra.mxu0 0
    %149 = vmatprep.subr.bf16.mxu0 0
    %150 = vmatpush1.bf16.msra.mxu0 0
    %151 = vmatprep.subr.bf16.mxu0 0
    %152 = vmatpush1.bf16.msra.mxu0 0
    %153 = vmatprep.subr.bf16.mxu0 0
    %154 = vmatpush1.bf16.msra.mxu0 0
    %155 = vmatprep.subr.bf16.mxu0 0
    %156 = vmatpush1.bf16.msra.mxu0 0
    %157 = vmatprep.subr.bf16.mxu0 0
    %158 = vmatpush1.bf16.msra.mxu0 0
    %159 = vmatprep.subr.bf16.mxu0 0
    %160 = vmatpush1.bf16.msra.mxu0 0
    %161 = vmatprep.mubr.bf16.mxu0 0
    %162 = vmatmul.mubr.bf16.gmra.mrb[0].mxu0 %v127
    %v163 = vpop.f32.mrb[0].mxu0
    %v164 = vadd.f32 %v112, %v163
    %v165 = vpop.f32.mrb[0].mxu0
    %v166 = vpop.f32.mrb[0].mxu0
    %v167 = vadd.f32 %v112, %v166
    %v168 = vpop.f32.mrb[0].mxu0
    %169 = vdwg.mxu0
    %v170 = vmax.f32 %v164, 0.0
    %v171 = vmax.f32 %v167, 0.0
    %v172 = vpack.c.bf16 %v171, %v170
    %v173 = vld [vmem:[#allocation7] sm:$0xff]
    %v174 = vld [vmem:[#allocation7 + $0x8] sm:$0xff]
    %v175 = vld [vmem:[#allocation7 + $0x10] sm:$0xff]
    %v176 = vld [vmem:[#allocation7 + $0x18] sm:$0xff]
    %v177 = vld [vmem:[#allocation7 + $0x20] sm:$0xff]
    %v178 = vld [vmem:[#allocation7 + $0x28] sm:$0xff]
    %v179 = vld [vmem:[#allocation7 + $0x30] sm:$0xff]
    %v180 = vld [vmem:[#allocation7 + $0x38] sm:$0xff]
    %v181 = vld [vmem:[#allocation7 + $0x40] sm:$0xff]
    %v182 = vld [vmem:[#allocation7 + $0x48] sm:$0xff]
    %v183 = vld [vmem:[#allocation7 + $0x50] sm:$0xff]
    %v184 = vld [vmem:[#allocation7 + $0x58] sm:$0xff]
    %v185 = vld [vmem:[#allocation7 + $0x60] sm:$0xff]
    %v186 = vld [vmem:[#allocation7 + $0x68] sm:$0xff]
    %v187 = vld [vmem:[#allocation7 + $0x70] sm:$0xff]
    %v188 = vld [vmem:[#allocation7 + $0x78] sm:$0xff]
    %v190 = vlaneseq
    %v191 = vshrl.u32 %v190, 7
    %v192 = vsub.s32 0, %v191
    %v193 = vrot.slane %v94, %v192
    %v194 = vlaneseq
    %v195 = vshrl.u32 %v194, 7
    %v196 = vsub.s32 1, %v195
    %v197 = vrot.slane %v94, %v196
    %v216 = vunpack.c.l.b16 %v173
    %v217 = vunpack.c.h.b16 %v173
    %v218 = vunpack.c.l.b16 %v174
    %v219 = vunpack.c.h.b16 %v174
    %v220 = vunpack.c.l.b16 %v175
    %v221 = vunpack.c.h.b16 %v175
    %v222 = vunpack.c.l.b16 %v176
    %v223 = vunpack.c.h.b16 %v176
    %v224 = vunpack.c.l.b16 %v177
    %v225 = vunpack.c.h.b16 %v177
    %v226 = vunpack.c.l.b16 %v178
    %v227 = vunpack.c.h.b16 %v178
    %v228 = vunpack.c.l.b16 %v179
    %v229 = vunpack.c.h.b16 %v179
    %v230 = vunpack.c.l.b16 %v180
    %v231 = vunpack.c.h.b16 %v180
    %v232 = vunpack.c.l.b16 %v181
    %v233 = vunpack.c.h.b16 %v181
    %v234 = vunpack.c.l.b16 %v182
    %v235 = vunpack.c.h.b16 %v182
    %v236 = vunpack.c.l.b16 %v183
    %v237 = vunpack.c.h.b16 %v183
    %v238 = vunpack.c.l.b16 %v184
    %v239 = vunpack.c.h.b16 %v184
    %v240 = vunpack.c.l.b16 %v185
    %v241 = vunpack.c.h.b16 %v185
    %v242 = vunpack.c.l.b16 %v186
    %v243 = vunpack.c.h.b16 %v186
    %v244 = vunpack.c.l.b16 %v187
    %v245 = vunpack.c.h.b16 %v187
    %v246 = vunpack.c.l.b16 %v188
    %v247 = vunpack.c.h.b16 %v188
    %v248 = vpack.c.b16 %v218, %v216
    %v249 = vpack.c.b16 %v219, %v217
    %v250 = vpack.c.b16 %v222, %v220
    %v251 = vpack.c.b16 %v223, %v221
    %v252 = vpack.c.b16 %v226, %v224
    %v253 = vpack.c.b16 %v227, %v225
    %v254 = vpack.c.b16 %v230, %v228
    %v255 = vpack.c.b16 %v231, %v229
    %v256 = vpack.c.b16 %v234, %v232
    %v257 = vpack.c.b16 %v235, %v233
    %v258 = vpack.c.b16 %v238, %v236
    %v259 = vpack.c.b16 %v239, %v237
    %v260 = vpack.c.b16 %v242, %v240
    %v261 = vpack.c.b16 %v243, %v241
    %v262 = vpack.c.b16 %v246, %v244
    %v263 = vpack.c.b16 %v247, %v245
    %280 = vmatprep.subr.bf16.mxu0 %v249
    %281 = vmatpush1.bf16.msra.mxu0 %v248
    %282 = vmatprep.subr.bf16.mxu0 %v251
    %283 = vmatpush1.bf16.msra.mxu0 %v250
    %284 = vmatprep.subr.bf16.mxu0 %v253
    %285 = vmatpush1.bf16.msra.mxu0 %v252
    %286 = vmatprep.subr.bf16.mxu0 %v255
    %287 = vmatpush1.bf16.msra.mxu0 %v254
    %288 = vmatprep.subr.bf16.mxu0 %v257
    %289 = vmatpush1.bf16.msra.mxu0 %v256
    %290 = vmatprep.subr.bf16.mxu0 %v259
    %291 = vmatpush1.bf16.msra.mxu0 %v258
    %292 = vmatprep.subr.bf16.mxu0 %v261
    %293 = vmatpush1.bf16.msra.mxu0 %v260
    %294 = vmatprep.subr.bf16.mxu0 %v263
    %295 = vmatpush1.bf16.msra.mxu0 %v262
    %296 = vmatprep.subr.bf16.mxu0 0
    %297 = vmatpush1.bf16.msra.mxu0 0
    %298 = vmatprep.subr.bf16.mxu0 0
    %299 = vmatpush1.bf16.msra.mxu0 0
    %300 = vmatprep.subr.bf16.mxu0 0
    %301 = vmatpush1.bf16.msra.mxu0 0
    %302 = vmatprep.subr.bf16.mxu0 0
    %303 = vmatpush1.bf16.msra.mxu0 0
    %304 = vmatprep.subr.bf16.mxu0 0
    %305 = vmatpush1.bf16.msra.mxu0 0
    %306 = vmatprep.subr.bf16.mxu0 0
    %307 = vmatpush1.bf16.msra.mxu0 0
    %308 = vmatprep.subr.bf16.mxu0 0
    %309 = vmatpush1.bf16.msra.mxu0 0
    %310 = vmatprep.subr.bf16.mxu0 0
    %311 = vmatpush1.bf16.msra.mxu0 0
    %312 = vmatprep.mubr.bf16.mxu0 0
    %313 = vmatmul.mubr.bf16.gmra.mrb[0].mxu0 %v172
    %v314 = vpop.f32.mrb[0].mxu0
    %v315 = vadd.f32 %v193, %v314
    %v316 = vpop.f32.mrb[0].mxu0
    %v317 = vadd.f32 %v197, %v316
    %v318 = vpop.f32.mrb[0].mxu0
    %v319 = vadd.f32 %v193, %v318
    %v320 = vpop.f32.mrb[0].mxu0
    %v321 = vadd.f32 %v197, %v320
    %322 = vdwg.mxu0
    %v323 = vmax.f32 %v315, 0.0
    %v324 = vmax.f32 %v317, 0.0
    %v325 = vmax.f32 %v319, 0.0
    %v326 = vmax.f32 %v321, 0.0
    %v327 = vpack.c.bf16 %v325, %v323
    %v328 = vpack.c.bf16 %v326, %v324
    %v329 = vld [vmem:[#allocation8] sm:$0xf]
    %v330 = vld [vmem:[#allocation8 + $0x4] sm:$0xf]
    %v331 = vld [vmem:[#allocation8 + $0x8] sm:$0xf]
    %v332 = vld [vmem:[#allocation8 + $0xc] sm:$0xf]
    %v333 = vld [vmem:[#allocation8 + $0x10] sm:$0xf]
    %v334 = vld [vmem:[#allocation8 + $0x14] sm:$0xf]
    %v335 = vld [vmem:[#allocation8 + $0x18] sm:$0xf]
    %v336 = vld [vmem:[#allocation8 + $0x1c] sm:$0xf]
    %v337 = vld [vmem:[#allocation8 + $0x20] sm:$0xf]
    %v338 = vld [vmem:[#allocation8 + $0x24] sm:$0xf]
    %v339 = vld [vmem:[#allocation8 + $0x28] sm:$0xf]
    %v340 = vld [vmem:[#allocation8 + $0x2c] sm:$0xf]
    %v341 = vld [vmem:[#allocation8 + $0x30] sm:$0xf]
    %v342 = vld [vmem:[#allocation8 + $0x34] sm:$0xf]
    %v343 = vld [vmem:[#allocation8 + $0x38] sm:$0xf]
    %v344 = vld [vmem:[#allocation8 + $0x3c] sm:$0xf]
    %v345 = vld [vmem:[#allocation8 + $0x40] sm:$0xf]
    %v346 = vld [vmem:[#allocation8 + $0x44] sm:$0xf]
    %v347 = vld [vmem:[#allocation8 + $0x48] sm:$0xf]
    %v348 = vld [vmem:[#allocation8 + $0x4c] sm:$0xf]
    %v349 = vld [vmem:[#allocation8 + $0x50] sm:$0xf]
    %v350 = vld [vmem:[#allocation8 + $0x54] sm:$0xf]
    %v351 = vld [vmem:[#allocation8 + $0x58] sm:$0xf]
    %v352 = vld [vmem:[#allocation8 + $0x5c] sm:$0xf]
    %v353 = vld [vmem:[#allocation8 + $0x60] sm:$0xf]
    %v354 = vld [vmem:[#allocation8 + $0x64] sm:$0xf]
    %v355 = vld [vmem:[#allocation8 + $0x68] sm:$0xf]
    %v356 = vld [vmem:[#allocation8 + $0x6c] sm:$0xf]
    %v357 = vld [vmem:[#allocation8 + $0x70] sm:$0xf]
    %v358 = vld [vmem:[#allocation8 + $0x74] sm:$0xf]
    %v359 = vld [vmem:[#allocation8 + $0x78] sm:$0xf]
    %v360 = vld [vmem:[#allocation8 + $0x7c] sm:$0xf]
    %v362 = vlaneseq
    %v363 = vshrl.u32 %v362, 7
    %v364 = vsub.s32 0, %v363
    %v365 = vrot.slane %v95, %v364
    %v399 = vunpack.c.l.b16 %v329
    %v400 = vunpack.c.l.b16 %v330
    %v401 = vunpack.c.l.b16 %v331
    %v402 = vunpack.c.l.b16 %v332
    %v403 = vunpack.c.l.b16 %v333
    %v404 = vunpack.c.l.b16 %v334
    %v405 = vunpack.c.l.b16 %v335
    %v406 = vunpack.c.l.b16 %v336
    %v407 = vunpack.c.l.b16 %v337
    %v408 = vunpack.c.l.b16 %v338
    %v409 = vunpack.c.l.b16 %v339
    %v410 = vunpack.c.l.b16 %v340
    %v411 = vunpack.c.l.b16 %v341
    %v412 = vunpack.c.l.b16 %v342
    %v413 = vunpack.c.l.b16 %v343
    %v414 = vunpack.c.l.b16 %v344
    %v415 = vunpack.c.l.b16 %v345
    %v416 = vunpack.c.l.b16 %v346
    %v417 = vunpack.c.l.b16 %v347
    %v418 = vunpack.c.l.b16 %v348
    %v419 = vunpack.c.l.b16 %v349
    %v420 = vunpack.c.l.b16 %v350
    %v421 = vunpack.c.l.b16 %v351
    %v422 = vunpack.c.l.b16 %v352
    %v423 = vunpack.c.l.b16 %v353
    %v424 = vunpack.c.l.b16 %v354
    %v425 = vunpack.c.l.b16 %v355
    %v426 = vunpack.c.l.b16 %v356
    %v427 = vunpack.c.l.b16 %v357
    %v428 = vunpack.c.l.b16 %v358
    %v429 = vunpack.c.l.b16 %v359
    %v430 = vunpack.c.l.b16 %v360
    %v431 = vpack.c.b16 %v400, %v399
    %v432 = vpack.c.b16 %v402, %v401
    %v433 = vpack.c.b16 %v404, %v403
    %v434 = vpack.c.b16 %v406, %v405
    %v435 = vpack.c.b16 %v408, %v407
    %v436 = vpack.c.b16 %v410, %v409
    %v437 = vpack.c.b16 %v412, %v411
    %v438 = vpack.c.b16 %v414, %v413
    %v439 = vpack.c.b16 %v416, %v415
    %v440 = vpack.c.b16 %v418, %v417
    %v441 = vpack.c.b16 %v420, %v419
    %v442 = vpack.c.b16 %v422, %v421
    %v443 = vpack.c.b16 %v424, %v423
    %v444 = vpack.c.b16 %v426, %v425
    %v445 = vpack.c.b16 %v428, %v427
    %v446 = vpack.c.b16 %v430, %v429
    %463 = vmatprep.subr.bf16.mxu0 0
    %464 = vmatpush1.bf16.msra.mxu0 %v431
    %465 = vmatprep.subr.bf16.mxu0 0
    %466 = vmatpush1.bf16.msra.mxu0 %v432
    %467 = vmatprep.subr.bf16.mxu0 0
    %468 = vmatpush1.bf16.msra.mxu0 %v433
    %469 = vmatprep.subr.bf16.mxu0 0
    %470 = vmatpush1.bf16.msra.mxu0 %v434
    %471 = vmatprep.subr.bf16.mxu0 0
    %472 = vmatpush1.bf16.msra.mxu0 %v435
    %473 = vmatprep.subr.bf16.mxu0 0
    %474 = vmatpush1.bf16.msra.mxu0 %v436
    %475 = vmatprep.subr.bf16.mxu0 0
    %476 = vmatpush1.bf16.msra.mxu0 %v437
    %477 = vmatprep.subr.bf16.mxu0 0
    %478 = vmatpush1.bf16.msra.mxu0 %v438
    %479 = vmatprep.subr.bf16.mxu0 0
    %480 = vmatpush1.bf16.msra.mxu0 %v439
    %481 = vmatprep.subr.bf16.mxu0 0
    %482 = vmatpush1.bf16.msra.mxu0 %v440
    %483 = vmatprep.subr.bf16.mxu0 0
    %484 = vmatpush1.bf16.msra.mxu0 %v441
    %485 = vmatprep.subr.bf16.mxu0 0
    %486 = vmatpush1.bf16.msra.mxu0 %v442
    %487 = vmatprep.subr.bf16.mxu0 0
    %488 = vmatpush1.bf16.msra.mxu0 %v443
    %489 = vmatprep.subr.bf16.mxu0 0
    %490 = vmatpush1.bf16.msra.mxu0 %v444
    %491 = vmatprep.subr.bf16.mxu0 0
    %492 = vmatpush1.bf16.msra.mxu0 %v445
    %493 = vmatprep.subr.bf16.mxu0 0
    %494 = vmatpush1.bf16.msra.mxu0 %v446
    %495 = vmatprep.mubr.bf16.mxu0 %v328
    %496 = vmatmul.mubr.bf16.gmra.mrb[0].mxu0 %v327
    %v497 = vpop.f32.mrb[0].mxu0
    %v498 = vadd.f32 %v365, %v497
    %v499 = vpop.f32.mrb[0].mxu0
    %v500 = vpop.f32.mrb[0].mxu0
    %v501 = vadd.f32 %v365, %v500
    %v502 = vpop.f32.mrb[0].mxu0
    %503 = vdwg.mxu0
    %v504 = vmax.f32 %v498, 0.0
    %v505 = vmax.f32 %v501, 0.0
    %v506 = vpack.c.bf16 %v505, %v504
    %v507 = vld [vmem:[#allocation10] sm:$0xf]
    %v508 = vld [vmem:[#allocation10 + $0x4] sm:$0xf]
    %v509 = vld [vmem:[#allocation10 + $0x8] sm:$0xf]
    %v510 = vld [vmem:[#allocation10 + $0xc] sm:$0xf]
    %v511 = vld [vmem:[#allocation10 + $0x10] sm:$0xf]
    %v512 = vld [vmem:[#allocation10 + $0x14] sm:$0xf]
    %v513 = vld [vmem:[#allocation10 + $0x18] sm:$0xf]
    %v514 = vld [vmem:[#allocation10 + $0x1c] sm:$0xf]
    %v515 = vld [vmem:[#allocation10 + $0x20] sm:$0xf]
    %v516 = vld [vmem:[#allocation10 + $0x24] sm:$0xf]
    %v517 = vld [vmem:[#allocation10 + $0x28] sm:$0xf]
    %v518 = vld [vmem:[#allocation10 + $0x2c] sm:$0xf]
    %v519 = vld [vmem:[#allocation10 + $0x30] sm:$0xf]
    %v520 = vld [vmem:[#allocation10 + $0x34] sm:$0xf]
    %v521 = vld [vmem:[#allocation10 + $0x38] sm:$0xf]
    %v522 = vld [vmem:[#allocation10 + $0x3c] sm:$0xf]
    %v524 = vlaneseq
    %v525 = vshrl.u32 %v524, 7
    %v526 = vsub.s32 0, %v525
    %v527 = vrot.slane %v96, %v526
    %v545 = vunpack.c.l.b16 %v507
    %v546 = vunpack.c.l.b16 %v508
    %v547 = vunpack.c.l.b16 %v509
    %v548 = vunpack.c.l.b16 %v510
    %v549 = vunpack.c.l.b16 %v511
    %v550 = vunpack.c.l.b16 %v512
    %v551 = vunpack.c.l.b16 %v513
    %v552 = vunpack.c.l.b16 %v514
    %v553 = vunpack.c.l.b16 %v515
    %v554 = vunpack.c.l.b16 %v516
    %v555 = vunpack.c.l.b16 %v517
    %v556 = vunpack.c.l.b16 %v518
    %v557 = vunpack.c.l.b16 %v519
    %v558 = vunpack.c.l.b16 %v520
    %v559 = vunpack.c.l.b16 %v521
    %v560 = vunpack.c.l.b16 %v522
    %v561 = vpack.c.b16 %v546, %v545
    %v562 = vpack.c.b16 %v548, %v547
    %v563 = vpack.c.b16 %v550, %v549
    %v564 = vpack.c.b16 %v552, %v551
    %v565 = vpack.c.b16 %v554, %v553
    %v566 = vpack.c.b16 %v556, %v555
    %v567 = vpack.c.b16 %v558, %v557
    %v568 = vpack.c.b16 %v560, %v559
    %577 = vmatprep.subr.bf16.mxu0 0
    %578 = vmatpush1.bf16.msra.mxu0 %v561
    %579 = vmatprep.subr.bf16.mxu0 0
    %580 = vmatpush1.bf16.msra.mxu0 %v562
    %581 = vmatprep.subr.bf16.mxu0 0
    %582 = vmatpush1.bf16.msra.mxu0 %v563
    %583 = vmatprep.subr.bf16.mxu0 0
    %584 = vmatpush1.bf16.msra.mxu0 %v564
    %585 = vmatprep.subr.bf16.mxu0 0
    %586 = vmatpush1.bf16.msra.mxu0 %v565
    %587 = vmatprep.subr.bf16.mxu0 0
    %588 = vmatpush1.bf16.msra.mxu0 %v566
    %589 = vmatprep.subr.bf16.mxu0 0
    %590 = vmatpush1.bf16.msra.mxu0 %v567
    %591 = vmatprep.subr.bf16.mxu0 0
    %592 = vmatpush1.bf16.msra.mxu0 %v568
    %593 = vmatprep.subr.bf16.mxu0 0
    %594 = vmatpush1.bf16.msra.mxu0 0
    %595 = vmatprep.subr.bf16.mxu0 0
    %596 = vmatpush1.bf16.msra.mxu0 0
    %597 = vmatprep.subr.bf16.mxu0 0
    %598 = vmatpush1.bf16.msra.mxu0 0
    %599 = vmatprep.subr.bf16.mxu0 0
    %600 = vmatpush1.bf16.msra.mxu0 0
    %601 = vmatprep.subr.bf16.mxu0 0
    %602 = vmatpush1.bf16.msra.mxu0 0
    %603 = vmatprep.subr.bf16.mxu0 0
    %604 = vmatpush1.bf16.msra.mxu0 0
    %605 = vmatprep.subr.bf16.mxu0 0
    %606 = vmatpush1.bf16.msra.mxu0 0
    %607 = vmatprep.subr.bf16.mxu0 0
    %608 = vmatpush1.bf16.msra.mxu0 0
    %609 = vmatprep.mubr.bf16.mxu0 0
    %610 = vmatmul.mubr.bf16.gmra.mrb[0].mxu0 %v506
    %v611 = vpop.f32.mrb[0].mxu0
    %v612 = vadd.f32 %v527, %v611
    %v613 = vpop.f32.mrb[0].mxu0
    %v614 = vpop.f32.mrb[0].mxu0
    %v615 = vadd.f32 %v527, %v614
    %v616 = vpop.f32.mrb[0].mxu0
    %617 = vdwg.mxu0
    %v618 = vmax.f32 %v612, 0.0
    %v619 = vmax.f32 %v615, 0.0
    %620 = vmatprep.subr.mxu0 0.0
    %621 = vmatpush1.xpose.msra.mxu0 %v618
    %622 = vmatprep.subr.mxu0 0.0
    %623 = vmatpush1.xpose.msra.mxu0 %v619
    %624 = vmatprep.subr.mxu0 0.0
    %625 = vmatpush1.xpose.msra.mxu0 0.0
    %626 = vmatprep.subr.mxu0 0.0
    %627 = vmatpush1.xpose.msra.mxu0 0.0
    %628 = vmatprep.subr.mxu0 0.0
    %629 = vmatpush1.xpose.msra.mxu0 0.0
    %630 = vmatprep.subr.mxu0 0.0
    %631 = vmatpush1.xpose.msra.mxu0 0.0
    %632 = vmatprep.subr.mxu0 0.0
    %633 = vmatpush1.xpose.msra.mxu0 0.0
    %634 = vmatprep.subr.mxu0 0.0
    %635 = vmatpush1.xpose.msra.mxu0 0.0
    %636 = vmatprep.subr.mxu0 0.0
    %637 = vmatpush1.xpose.msra.mxu0 0.0
    %638 = vmatprep.subr.mxu0 0.0
    %639 = vmatpush1.xpose.msra.mxu0 0.0
    %640 = vmatprep.subr.mxu0 0.0
    %641 = vmatpush1.xpose.msra.mxu0 0.0
    %642 = vmatprep.subr.mxu0 0.0
    %643 = vmatpush1.xpose.msra.mxu0 0.0
    %644 = vmatprep.subr.mxu0 0.0
    %645 = vmatpush1.xpose.msra.mxu0 0.0
    %646 = vmatprep.subr.mxu0 0.0
    %647 = vmatpush1.xpose.msra.mxu0 0.0
    %648 = vmatprep.subr.mxu0 0.0
    %649 = vmatpush1.xpose.msra.mxu0 0.0
    %650 = vmatprep.subr.mxu0 0.0
    %651 = vmatpush1.xpose.msra.mxu0 0.0
    %652 = vmatprep.subr.mxu0 0.0
    %653 = vmatpush1.xpose.msra.mxu0 0.0
    %654 = vmatprep.subr.mxu0 0.0
    %655 = vmatpush1.xpose.msra.mxu0 0.0
    %656 = vmatprep.subr.mxu0 0.0
    %657 = vmatpush1.xpose.msra.mxu0 0.0
    %658 = vmatprep.subr.mxu0 0.0
    %659 = vmatpush1.xpose.msra.mxu0 0.0
    %660 = vmatprep.subr.mxu0 0.0
    %661 = vmatpush1.xpose.msra.mxu0 0.0
    %662 = vmatprep.subr.mxu0 0.0
    %663 = vmatpush1.xpose.msra.mxu0 0.0
    %664 = vmatprep.subr.mxu0 0.0
    %665 = vmatpush1.xpose.msra.mxu0 0.0
    %666 = vmatprep.subr.mxu0 0.0
    %667 = vmatpush1.xpose.msra.mxu0 0.0
    %668 = vmatprep.subr.mxu0 0.0
    %669 = vmatpush1.xpose.msra.mxu0 0.0
    %670 = vmatprep.subr.mxu0 0.0
    %671 = vmatpush1.xpose.msra.mxu0 0.0
    %672 = vmatprep.subr.mxu0 0.0
    %673 = vmatpush1.xpose.msra.mxu0 0.0
    %674 = vmatprep.subr.mxu0 0.0
    %675 = vmatpush1.xpose.msra.mxu0 0.0
    %676 = vmatprep.subr.mxu0 0.0
    %677 = vmatpush1.xpose.msra.mxu0 0.0
    %678 = vmatprep.subr.mxu0 0.0
    %679 = vmatpush1.xpose.msra.mxu0 0.0
    %680 = vmatprep.subr.mxu0 0.0
    %681 = vmatpush1.xpose.msra.mxu0 0.0
    %682 = vmatprep.subr.mxu0 0.0
    %683 = vmatpush1.xpose.msra.mxu0 0.0
    %684 = vmatprep.mubr.f32.mxu0 0.0
    %685 = vmatmul.mubr.f32.gmra.mrb[0].mxu0 %v102
    %v686 = vpop.f32.mrb[0].mxu0
    %v687 = vadd.f32 0.0, %v686
    %v688 = vpop.f32.mrb[0].mxu0
    %689 = vdwg.mxu0
    %vm690 = vcmask 122880
    %691 = vst.msk [vmem:[#allocation11] sm:$0x1] %vm690, %v687
    // Predicated region
    $region46: #{tpu_custom_call.1} parent=1 // pred_check
      _
    $region47: #{tpu_custom_call.1} parent=1 // pred_check_branch
      %693 = sbr.rel (0) target = $region49
    $region48: #{tpu_custom_call.1} parent=1 // pred_region
      %s695 = ssub.s32 16, 16
      %696 = vsyncadd [#allocation4], %s695
      %s698 = sshll.u32 [#allocation11], 4
      %s699 = int_to_ptr.vmem [resolvable:$true] %s698
      %701 = dma.vmem_to_hbm [thread:$0]  %s699, 16, %s6, [#allocation4]
    $region49: #{tpu_custom_call.1} parent=1 // pred_fallthru
      _
    // Predicated region
    $region50: #{tpu_custom_call.1} parent=1 // pred_check
      _
    $region51: #{tpu_custom_call.1} parent=1 // pred_check_branch
      %703 = sbr.rel (0) target = $region53
    $region52: #{tpu_custom_call.1} parent=1 // pred_region
      %704 = dma.done [#allocation4], 16
    $region53: #{tpu_custom_call.1} parent=1 // pred_fallthru
      _
    %705 = vsyncpa [#allocation3], 1
    %706 = vsyncpa [#allocation6], 1
    %707 = vsyncpa [#allocation9], 1
    %708 = vsyncpa [#allocation4], 1

</llo_original>
